<compile_context>
chip_gen: v5e
topology: v5e:2x2
jax: 0.10.0
libtpu: 0.0.40
codegen_flags: <defaults>
</compile_context>

<pallas_src>
import math

import jax
import jax.numpy as jnp
from jax.experimental import pallas as pl
from jax.experimental.pallas import tpu as pltpu

_HALF_LN_2PI = 0.5 * math.log(2.0 * math.pi)


def _softplus(x):
    # numerically-stable softplus: log1p(exp(-|x|)) + max(x, 0)
    return jnp.log1p(jnp.exp(-jnp.abs(x))) + jnp.maximum(x, 0.0)


def _uncertainty_partial_kernel(pred_ref, target_ref, maxlv_ref, minlv_ref, o_ref):
    """One (TB, S) batch block per grid step.

    Writes a (1, S) lane-wise partial sum of |mean - target| * log_prob.
    (The constant -weight factor is applied once in the wrapper.)
    """
    # Cast AFTER the load so the HBM->VMEM DMA moves the narrow dtype.
    mean = pred_ref[0].astype(jnp.float32)          # (TB, S)
    log_var = pred_ref[1].astype(jnp.float32)       # (TB, S)
    target = target_ref[...].astype(jnp.float32)    # (TB, S) or (TB, 1)
    max_lv = maxlv_ref[...].astype(jnp.float32)     # (1, S)
    min_lv = minlv_ref[...].astype(jnp.float32)     # (1, S)

    # log_var = max_logvar - softplus(max_logvar - log_var)
    log_var = max_lv - _softplus(max_lv - log_var)
    # log_var = min_logvar + softplus(log_var - min_logvar)
    log_var = min_lv + _softplus(log_var - min_lv)

    # Normal(mean, std=exp(log_var/2)).log_prob(target)
    #   = -0.5*(target-mean)^2 * exp(-log_var) - 0.5*log_var - 0.5*log(2*pi)
    diff = target - mean                              # (TB, S) via broadcast
    log_prob = (-0.5 * diff * diff * jnp.exp(-log_var)
                - 0.5 * log_var
                - jnp.float32(_HALF_LN_2PI))

    # weight hoisted to the wrapper: accumulate |diff| * log_prob only.
    # Sublane-only reduction here; the cross-lane reduce happens on the tiny
    # (num_blocks, S) partials array in the wrapper.
    o_ref[...] = jnp.sum(jnp.abs(diff) * log_prob, axis=0, keepdims=True)


def _partial_sums(pred_t, tgt2d, max_logvar, min_logvar, tb, grid):
    """Pallas call returning (grid, S) lane-wise partial sums over rows [0, grid*tb)."""
    S = pred_t.shape[2]
    St = tgt2d.shape[1]

    elems = grid * tb * S
    cost = pl.CostEstimate(
        flops=20 * elems,
        transcendentals=5 * elems,  # 2x softplus (exp+log1p each) + exp(-log_var)
        bytes_accessed=int(2 * elems * jnp.dtype(pred_t.dtype).itemsize
                           + grid * tb * St * jnp.dtype(tgt2d.dtype).itemsize
                           + 2 * S * 4 + grid * S * 4),
    )

    return pl.pallas_call(
        _uncertainty_partial_kernel,
        out_shape=jax.ShapeDtypeStruct((grid, S), jnp.float32),
        grid=(grid,),
        in_specs=[
            pl.BlockSpec((2, tb, S), lambda i: (0, i, 0)),   # pred slab (2, B, S)
            pl.BlockSpec((tb, St), lambda i: (i, 0)),        # target (B, S) or (B, 1)
            pl.BlockSpec((1, S), lambda i: (0, 0)),          # max_logvar (1, S)
            pl.BlockSpec((1, S), lambda i: (0, 0)),          # min_logvar (1, S)
        ],
        out_specs=pl.BlockSpec((1, S), lambda i: (i, 0)),    # per-block partials
        compiler_params=pltpu.CompilerParams(
            dimension_semantics=("parallel",),               # v7x megacore splits batch
            allow_input_fusion=[True, False, False, False],  # let XLA fold the transpose
        ),
        cost_estimate=cost,
    )(pred_t, tgt2d, max_logvar, min_logvar)


def uncertainty_loss(preded, target, max_logvar, min_logvar, weight=1.0,
                     *, block_rows=2048):
    """preded: (B, S, 2) with last dim = {mean, log_var}; target: (B, S) or (B,).

    Returns a scalar f32 loss matching UncertaintyLoss.forward.
    """
    B, S, two = preded.shape
    assert two == 2, "last dim of preded must be 2 (mean, log_var)"

    if max_logvar.ndim == 1:
        max_logvar = max_logvar.reshape(1, -1)
    if min_logvar.ndim == 1:
        min_logvar = min_logvar.reshape(1, -1)

    # torch: 1-D target -> unsqueeze(-1).  Keep it (B, 1) and broadcast in VMEM.
    tgt2d = target.reshape(B, 1) if target.ndim == 1 else target

    # Single lane-dense rearrangement of preded (kept; see header / TODO).
    pred_t = jnp.transpose(preded, (2, 0, 1))          # (2, B, S), original dtype

    # Batch tile: aligned to the dtype's sublane packing and capped so the
    # double-buffered f32 working set stays well under the scoped-VMEM default
    # (~12 MiB of inputs per buffer), so no vmem_limit_bytes override needed.
    itemsize = jnp.dtype(preded.dtype).itemsize
    sub = max(8, 32 // max(1, itemsize))               # 8 f32 / 16 bf16 / 32 int8
    per_row_f32 = (2 * S + tgt2d.shape[1]) * 4
    tb_fit = max(sub, (12 << 20) // (2 * per_row_f32))
    tb = min(int(block_rows), tb_fit)
    tb = max(sub, (tb // sub) * sub)
    if tb >= B:
        tb, grid, rem = B, 1, 0                        # one full-extent block (any B)
    else:
        grid = B // tb
        rem = B - grid * tb

    total = jnp.sum(_partial_sums(pred_t, tgt2d, max_logvar, min_logvar, tb, grid))
    if rem > 0:
        # Tail (< tb rows): tiny slices processed as one full-extent block.
        # Avoids a full-array jnp.pad and any out-of-bounds boundary block.
        total = total + jnp.sum(_partial_sums(
            pred_t[:, grid * tb:, :], tgt2d[grid * tb:, :],
            max_logvar, min_logvar, rem, 1))

    # mean(reward * log_prob) = -weight * sum(|diff| * log_prob) / (B*S)
    mean_term = -jnp.asarray(weight, jnp.float32) * total / jnp.float32(B * S)
    # Tiny (1, S) parameter regularizer, computed once in the wrapper.
    reg = 0.01 * (jnp.mean(max_logvar.astype(jnp.float32))
                  - jnp.mean(min_logvar.astype(jnp.float32)))
    return mean_term + reg


def _reference_loss(preded, target, max_logvar, min_logvar, weight=1.0):
    # pure-JAX reference of the PyTorch forward (verification only)
    if target.ndim == 1:
        target = target[:, None]
    mean = preded[..., 0].astype(jnp.float32)
    lv = preded[..., 1].astype(jnp.float32)
    target = target.astype(jnp.float32)
    maxlv = max_logvar.astype(jnp.float32).reshape(1, -1)
    minlv = min_logvar.astype(jnp.float32).reshape(1, -1)
    lv = maxlv - jax.nn.softplus(maxlv - lv)
    lv = minlv + jax.nn.softplus(lv - minlv)
    std = jnp.exp(lv / 2.0)
    log_prob = (-((target - mean) ** 2) / (2.0 * std ** 2)
                - jnp.log(std) - math.log(math.sqrt(2.0 * math.pi)))
    reward = -weight * jnp.abs(mean - target)
    return (jnp.mean(reward * log_prob)
            + 0.01 * jnp.mean(maxlv) - 0.01 * jnp.mean(minlv))


if __name__ == "__main__":
    key = jax.random.PRNGKey(0)
    k1, k2, k3, k4, k5, k6, k7, k8 = jax.random.split(key, 8)

    S = 128  # per-sample output dim (module shape=(S,))
    max_logvar = jax.random.normal(k1, (1, S), dtype=jnp.float32)
    min_logvar = 0.1 * jax.random.normal(k2, (1, S), dtype=jnp.float32)

    # Case 1: single full-extent block (B=12, not a multiple of 8), 2-D target.
    B = 12
    preded = jax.random.normal(k3, (B, S, 2), dtype=jnp.float32)
    target = jax.random.normal(k4, (B, S), dtype=jnp.float32)
    loss = jax.block_until_ready(
        uncertainty_loss(preded, target, max_logvar, min_logvar, weight=1.0))
    ref = _reference_loss(preded, target, max_logvar, min_logvar, weight=1.0)
    assert jnp.allclose(loss, ref, atol=1e-4, rtol=1e-4), (loss, ref)

    # Case 2: multi-block parallel grid (2 x 8 rows) + tail call (4 rows),
    # 1-D target passed as (B, 1) and broadcast in VMEM.
    B2 = 20
    preded2 = jax.random.normal(k5, (B2, S, 2), dtype=jnp.float32)
    target2 = jax.random.normal(k6, (B2,), dtype=jnp.float32)
    loss2 = jax.block_until_ready(
        uncertainty_loss(preded2, target2, max_logvar, min_logvar,
                         weight=0.5, block_rows=8))
    ref2 = _reference_loss(preded2, target2, max_logvar, min_logvar, weight=0.5)
    assert jnp.allclose(loss2, ref2, atol=1e-4, rtol=1e-4), (loss2, ref2)

    # Case 3: bf16 inputs (16-row sublane packing, narrow dtype kept through
    # the DMA, f32 upcast in-kernel), 1-D bf16 target.
    B3 = 16
    preded3 = jax.random.normal(k7, (B3, S, 2), dtype=jnp.bfloat16)
    target3 = jax.random.normal(k8, (B3,), dtype=jnp.bfloat16)
    loss3 = jax.block_until_ready(
        uncertainty_loss(preded3, target3, max_logvar, min_logvar, weight=1.0))
    ref3 = _reference_loss(preded3, target3, max_logvar, min_logvar, weight=1.0)
    assert jnp.allclose(loss3, ref3, atol=1e-4, rtol=1e-4), (loss3, ref3)

    print("KERNEL_OK")
</pallas_src>

<mosaic_0001>
module attributes {stable_mosaic.version = 11 : i64} {
  func.func @_uncertainty_partial_kernel(%arg0: i32, %arg1: memref<2x12x128xf32, #tpu.memory_space<vmem>>, %arg2: memref<12x128xf32, #tpu.memory_space<vmem>>, %arg3: memref<1x128xf32, #tpu.memory_space<vmem>>, %arg4: memref<1x128xf32, #tpu.memory_space<vmem>>, %arg5: memref<1x128xf32, #tpu.memory_space<vmem>>) attributes {dimension_semantics = [#tpu.dimension_semantics<parallel>], iteration_bounds = array<i64: 1>, scalar_prefetch = 0 : i64, scratch_operands = 0 : i64, tpu.core_type = #tpu.core_type<tc>, window_params = [{transform_indices = @transform_0, window_bounds = array<i64: 2, 12, 128>}, {transform_indices = @transform_1, window_bounds = array<i64: 12, 128>}, {pipeline_mode = #tpu.pipeline_mode<synchronous>, transform_indices = @transform_2, window_bounds = array<i64: 1, 128>}, {pipeline_mode = #tpu.pipeline_mode<synchronous>, transform_indices = @transform_3, window_bounds = array<i64: 1, 128>}, {transform_indices = @transform_4, window_bounds = array<i64: 1, 128>}]} {
    %c0 = arith.constant 0 : index
    %c0_0 = arith.constant 0 : index
    %c0_1 = arith.constant 0 : index
    %0 = vector.load %arg1[%c0, %c0_0, %c0_1] : memref<2x12x128xf32, #tpu.memory_space<vmem>>, vector<1x12x128xf32>
    %1 = vector.shape_cast %0 : vector<1x12x128xf32> to vector<12x128xf32>
    %c1 = arith.constant 1 : index
    %c0_2 = arith.constant 0 : index
    %c0_3 = arith.constant 0 : index
    %2 = vector.load %arg1[%c1, %c0_2, %c0_3] : memref<2x12x128xf32, #tpu.memory_space<vmem>>, vector<1x12x128xf32>
    %3 = vector.shape_cast %2 : vector<1x12x128xf32> to vector<12x128xf32>
    %c0_4 = arith.constant 0 : index
    %c0_5 = arith.constant 0 : index
    %4 = vector.load %arg2[%c0_4, %c0_5] : memref<12x128xf32, #tpu.memory_space<vmem>>, vector<12x128xf32>
    %c0_6 = arith.constant 0 : index
    %c0_7 = arith.constant 0 : index
    %5 = vector.load %arg3[%c0_6, %c0_7] : memref<1x128xf32, #tpu.memory_space<vmem>>, vector<1x128xf32>
    %c0_8 = arith.constant 0 : index
    %c0_9 = arith.constant 0 : index
    %6 = vector.load %arg4[%c0_8, %c0_9] : memref<1x128xf32, #tpu.memory_space<vmem>>, vector<1x128xf32>
    %7 = vector.broadcast %5 : vector<1x128xf32> to vector<12x128xf32>
    %8 = arith.subf %7, %3 : vector<12x128xf32>
    %9 = math.absf %8 : vector<12x128xf32>
    %cst = arith.constant 0.000000e+00 : f32
    %10 = vector.broadcast %cst : f32 to vector<12x128xf32>
    %11 = arith.subf %10, %9 : vector<12x128xf32>
    %12 = math.exp %11 : vector<12x128xf32>
    %13 = math.log1p %12 : vector<12x128xf32>
    %cst_10 = arith.constant 0.000000e+00 : f32
    %14 = vector.broadcast %cst_10 : f32 to vector<12x128xf32>
    %15 = arith.maximumf %8, %14 : vector<12x128xf32>
    %16 = arith.addf %13, %15 : vector<12x128xf32>
    %17 = vector.broadcast %5 : vector<1x128xf32> to vector<12x128xf32>
    %18 = arith.subf %17, %16 : vector<12x128xf32>
    %19 = vector.broadcast %6 : vector<1x128xf32> to vector<12x128xf32>
    %20 = arith.subf %18, %19 : vector<12x128xf32>
    %21 = math.absf %20 : vector<12x128xf32>
    %cst_11 = arith.constant 0.000000e+00 : f32
    %22 = vector.broadcast %cst_11 : f32 to vector<12x128xf32>
    %23 = arith.subf %22, %21 : vector<12x128xf32>
    %24 = math.exp %23 : vector<12x128xf32>
    %25 = math.log1p %24 : vector<12x128xf32>
    %cst_12 = arith.constant 0.000000e+00 : f32
    %26 = vector.broadcast %cst_12 : f32 to vector<12x128xf32>
    %27 = arith.maximumf %20, %26 : vector<12x128xf32>
    %28 = arith.addf %25, %27 : vector<12x128xf32>
    %29 = vector.broadcast %6 : vector<1x128xf32> to vector<12x128xf32>
    %30 = arith.addf %29, %28 : vector<12x128xf32>
    %31 = arith.subf %4, %1 : vector<12x128xf32>
    %cst_13 = arith.constant -5.000000e-01 : f32
    %32 = vector.broadcast %cst_13 : f32 to vector<12x128xf32>
    %33 = arith.mulf %32, %31 : vector<12x128xf32>
    %34 = arith.mulf %33, %31 : vector<12x128xf32>
    %cst_14 = arith.constant 0.000000e+00 : f32
    %35 = vector.broadcast %cst_14 : f32 to vector<12x128xf32>
    %36 = arith.subf %35, %30 : vector<12x128xf32>
    %37 = math.exp %36 : vector<12x128xf32>
    %38 = arith.mulf %34, %37 : vector<12x128xf32>
    %cst_15 = arith.constant 5.000000e-01 : f32
    %39 = vector.broadcast %cst_15 : f32 to vector<12x128xf32>
    %40 = arith.mulf %39, %30 : vector<12x128xf32>
    %41 = arith.subf %38, %40 : vector<12x128xf32>
    %cst_16 = arith.constant 0.918938517 : f32
    %42 = vector.broadcast %cst_16 : f32 to vector<12x128xf32>
    %43 = arith.subf %41, %42 : vector<12x128xf32>
    %44 = math.absf %31 : vector<12x128xf32>
    %45 = arith.mulf %44, %43 : vector<12x128xf32>
    %cst_17 = arith.constant dense<0.000000e+00> : vector<128xf32>
    %46 = vector.multi_reduction <add>, %45, %cst_17 [0] : vector<12x128xf32> to vector<128xf32>
    %47 = vector.shape_cast %46 : vector<128xf32> to vector<1x128xf32>
    %c0_18 = arith.constant 0 : index
    %c0_19 = arith.constant 0 : index
    %48 = vector.load %arg5[%c0_18, %c0_19] : memref<1x128xf32, #tpu.memory_space<vmem>>, vector<1x128xf32>
    tpu.vector_store %arg5[%c0_18, %c0_19], %47 {strides = array<i32>} : memref<1x128xf32, #tpu.memory_space<vmem>>, vector<1x128xf32>,
    return
  }
  func.func @transform_0(%arg0: i32) -> (i32, i32, i32) {
    %c0_i32 = arith.constant 0 : i32
    %c0_i32_0 = arith.constant 0 : i32
    %c0_i32_1 = arith.constant 0 : i32
    return %c0_i32, %arg0, %c0_i32_0 : i32, i32, i32
  }
  func.func @transform_1(%arg0: i32) -> (i32, i32) {
    %c0_i32 = arith.constant 0 : i32
    %c0_i32_0 = arith.constant 0 : i32
    return %arg0, %c0_i32 : i32, i32
  }
  func.func @transform_2(%arg0: i32) -> (i32, i32) {
    %c0_i32 = arith.constant 0 : i32
    %c0_i32_0 = arith.constant 0 : i32
    %c0_i32_1 = arith.constant 0 : i32
    return %c0_i32, %c0_i32_0 : i32, i32
  }
  func.func @transform_3(%arg0: i32) -> (i32, i32) {
    %c0_i32 = arith.constant 0 : i32
    %c0_i32_0 = arith.constant 0 : i32
    %c0_i32_1 = arith.constant 0 : i32
    return %c0_i32, %c0_i32_0 : i32, i32
  }
  func.func @transform_4(%arg0: i32) -> (i32, i32) {
    %c0_i32 = arith.constant 0 : i32
    %c0_i32_0 = arith.constant 0 : i32
    return %arg0, %c0_i32 : i32, i32
  }
}

</mosaic_0001>

<llo_original>
// kernel: tpu_custom_call.1
$region0: #{tpu_custom_call.1}
  #allocation0 [shape = 'u32[]', space=smem, size = 0x4, offset = 0x4, fixed_abs, tag = 'smem constant byte address 0x4 - core index']
  #allocation1 [shape = 'u32[72,128]{1,0:T(1,128)}', space=vmem, size = 0x9000, scoped, tag = 'internal scratch']
  %s0 = inlined_call_operand.vmem [shape: f32[2,12,128], index: 0, kind: input, shape index: {}]
  %s1 = inlined_call_operand.vmem [shape: f32[12,128], index: 1, kind: input, shape index: {}]
  %s2 = inlined_call_operand.vmem [shape: f32[1,128], index: 2, kind: input, shape index: {}]
  %s3 = inlined_call_operand.vmem [shape: f32[1,128], index: 3, kind: input, shape index: {}]
  %s4 = inlined_call_operand.hbm [shape: f32[1,128], index: 4, kind: output, shape index: {}]
  %s5 = sld [smem:[#allocation0]]
  $region26: #{tpu_custom_call.1} parent=0
    _
  %s7 = ssub.s32 1, %s5
  %s8 = scalar_select 0, %s7, %s5
  $region1: #{tpu_custom_call.1} parent=0
    #allocation2 [shape = 'u8[512]{0}', space=vmem, size = 0x400, scoped, tag = 'output window, operand 0, single buffered']
    #allocation3 [shape = 's32[1]{0}', space=sflag, size = 0x4, scoped, tag = 'scoped memory for tpu_custom_call.1']
    %9 = vsyncpa [#allocation3], 0
    // Predicated region
    $region2: #{tpu_custom_call.1} parent=1 // pred_check
      _
    $region3: #{tpu_custom_call.1} parent=1 // pred_check_branch
      %11 = sbr.rel (0) target = $region5
    $region4: #{tpu_custom_call.1} parent=1 // pred_region
      _
    $region5: #{tpu_custom_call.1} parent=1 // pred_fallthru
      _
    // Predicated region
    $region6: #{tpu_custom_call.1} parent=1 // pred_check
      _
    $region7: #{tpu_custom_call.1} parent=1 // pred_check_branch
      %13 = sbr.rel (0) target = $region9
    $region8: #{tpu_custom_call.1} parent=1 // pred_region
      _
    $region9: #{tpu_custom_call.1} parent=1 // pred_fallthru
      _
    // Predicated region
    $region10: #{tpu_custom_call.1} parent=1 // pred_check
      _
    $region11: #{tpu_custom_call.1} parent=1 // pred_check_branch
      %15 = sbr.rel (0) target = $region13
    $region12: #{tpu_custom_call.1} parent=1 // pred_region
      _
    $region13: #{tpu_custom_call.1} parent=1 // pred_fallthru
      _
    // Predicated region
    $region14: #{tpu_custom_call.1} parent=1 // pred_check
      _
    $region15: #{tpu_custom_call.1} parent=1 // pred_check_branch
      %17 = sbr.rel (0) target = $region17
    $region16: #{tpu_custom_call.1} parent=1 // pred_region
      _
    $region17: #{tpu_custom_call.1} parent=1 // pred_fallthru
      _
    %v18 = vld [vmem:[%s0] sm:$0xff]
    %v19 = vld [vmem:[%s0 + $0x8] sm:$0xf]
    %s20 = scalar_lea.vmem %s0, 16
    %v21 = vld [vmem:[%s20] sm:$0xff]
    %v22 = vld [vmem:[%s20 + $0x8] sm:$0xf]
    %v23 = vld [vmem:[%s1] sm:$0xff]
    %v24 = vld [vmem:[%s1 + $0x8] sm:$0xf]
    %v25 = vld [vmem:[%s2] sm:$0x1]
    %v26 = vld [vmem:[%s3] sm:$0x1]
    %v28 = vperm.slane %v25, 0
    %v30 = vsub.f32 %v28, %v21
    %v31 = vsub.f32 %v28, %v22
    %v32 = vand.u32 2147483647, %v30
    %v33 = vand.u32 2147483647, %v31
    %v34 = vsub.f32 0.0, %v32
    %v35 = vsub.f32 0.0, %v33
    %v36 = vmul.f32 %v34, 1.442695
    %v37 = vpow.pop %v36
    %v38 = vmul.f32 %v35, 1.442695
    %v39 = vpow.pop %v38
    %v40 = vadd.f32 %v37, 1.0
    %v41 = vlog2.pop %v40
    %v42 = vmul.f32 %v41, 0.6931472
    %v43 = vmul.f32 -0.5, %v37
    %v44 = vadd.f32 %v43, 1.0
    %v45 = vmul.f32 %v44, %v37
    %v46 = vand.u32 2147483647, %v37
    %vm47 = vcmp.lt.f32.partialorder %v46, 0.0004427343
    %v48 = vsel %vm47, %v45, %v42
    %v49 = vadd.f32 %v39, 1.0
    %v50 = vlog2.pop %v49
    %v51 = vmul.f32 %v50, 0.6931472
    %v52 = vmul.f32 -0.5, %v39
    %v53 = vadd.f32 %v52, 1.0
    %v54 = vmul.f32 %v53, %v39
    %v55 = vand.u32 2147483647, %v39
    %vm56 = vcmp.lt.f32.partialorder %v55, 0.0004427343
    %v57 = vsel %vm56, %v54, %v51
    %v58 = vmax.f32 %v30, 0.0
    %v59 = vmax.f32 %v31, 0.0
    %v60 = vadd.f32 %v48, %v58
    %v61 = vadd.f32 %v57, %v59
    %v62 = vsub.f32 %v28, %v60
    %v63 = vsub.f32 %v28, %v61
    %v65 = vperm.slane %v26, 0
    %v67 = vsub.f32 %v62, %v65
    %v68 = vsub.f32 %v63, %v65
    %v69 = vand.u32 2147483647, %v67
    %v70 = vand.u32 2147483647, %v68
    %v71 = vsub.f32 0.0, %v69
    %v72 = vsub.f32 0.0, %v70
    %v73 = vmul.f32 %v71, 1.442695
    %v74 = vpow.pop %v73
    %v75 = vmul.f32 %v72, 1.442695
    %v76 = vpow.pop %v75
    %v77 = vadd.f32 %v74, 1.0
    %v78 = vlog2.pop %v77
    %v79 = vmul.f32 %v78, 0.6931472
    %v80 = vmul.f32 -0.5, %v74
    %v81 = vadd.f32 %v80, 1.0
    %v82 = vmul.f32 %v81, %v74
    %v83 = vand.u32 2147483647, %v74
    %vm84 = vcmp.lt.f32.partialorder %v83, 0.0004427343
    %v85 = vsel %vm84, %v82, %v79
    %v86 = vadd.f32 %v76, 1.0
    %v87 = vlog2.pop %v86
    %v88 = vmul.f32 %v87, 0.6931472
    %v89 = vmul.f32 -0.5, %v76
    %v90 = vadd.f32 %v89, 1.0
    %v91 = vmul.f32 %v90, %v76
    %v92 = vand.u32 2147483647, %v76
    %vm93 = vcmp.lt.f32.partialorder %v92, 0.0004427343
    %v94 = vsel %vm93, %v91, %v88
    %v95 = vmax.f32 %v67, 0.0
    %v96 = vmax.f32 %v68, 0.0
    %v97 = vadd.f32 %v85, %v95
    %v98 = vadd.f32 %v94, %v96
    %v99 = vadd.f32 %v65, %v97
    %v100 = vadd.f32 %v65, %v98
    %v101 = vsub.f32 %v23, %v18
    %v102 = vsub.f32 %v24, %v19
    %v103 = vmul.f32 %v101, -0.5
    %v104 = vmul.f32 %v102, -0.5
    %v105 = vmul.f32 %v103, %v101
    %v106 = vmul.f32 %v104, %v102
    %v107 = vsub.f32 0.0, %v99
    %v108 = vsub.f32 0.0, %v100
    %v109 = vmul.f32 %v107, 1.442695
    %v110 = vpow.pop %v109
    %v111 = vmul.f32 %v108, 1.442695
    %v112 = vpow.pop %v111
    %v113 = vmul.f32 %v105, %v110
    %v114 = vmul.f32 %v106, %v112
    %v115 = vmul.f32 %v99, 0.5
    %v116 = vmul.f32 %v100, 0.5
    %v117 = vsub.f32 %v113, %v115
    %v118 = vsub.f32 %v114, %v116
    %v119 = vsub.f32 %v117, 0.9189385
    %v120 = vsub.f32 %v118, 0.9189385
    %v121 = vand.u32 2147483647, %v101
    %v122 = vand.u32 2147483647, %v102
    %v123 = vmul.f32 %v121, %v119
    %v124 = vmul.f32 %v122, %v120
    %vm125 = vcmask 1043456
    %v126 = vsel %vm125, %v124, 0.0
    %v127 = vadd.f32 %v123, %v126
    %v128 = vrot.slane %v127, 4
    %v129 = vadd.f32 %v127, %v128
    %v130 = vrot.slane %v129, 2
    %v131 = vadd.f32 %v129, %v130
    %v132 = vrot.slane %v131, 1
    %v133 = vadd.f32 %v131, %v132
    %134 = vst [vmem:[#allocation2] sm:$0x1] %v133
    // Predicated region
    $region18: #{tpu_custom_call.1} parent=1 // pred_check
      _
    $region19: #{tpu_custom_call.1} parent=1 // pred_check_branch
      %136 = sbr.rel (0) target = $region21
    $region20: #{tpu_custom_call.1} parent=1 // pred_region
      %138 = vsyncadd [#allocation3], 0
      %s140 = sshll.u32 [#allocation2], 4
      %s141 = int_to_ptr.vmem [resolvable:$true] %s140
      %s142 = sshll.u32 %s4, 4
      %s143 = int_to_ptr.hbm [resolvable:$true] %s142
      %145 = dma.vmem_to_hbm [thread:$0]  %s141, 16, %s143, [#allocation3]
    $region21: #{tpu_custom_call.1} parent=1 // pred_fallthru
      _
    // Predicated region
    $region22: #{tpu_custom_call.1} parent=1 // pred_check
      _
    $region23: #{tpu_custom_call.1} parent=1 // pred_check_branch
      %147 = sbr.rel (0) target = $region25
    $region24: #{tpu_custom_call.1} parent=1 // pred_region
      %149 = dma.done [#allocation3], 16
    $region25: #{tpu_custom_call.1} parent=1 // pred_fallthru
      _
    %150 = vsyncpa [#allocation3], 1

</llo_original>
